<compile_context>
chip_gen: v7x
topology: tpu7x:2x2x1
jax: 0.10.0
libtpu: 0.0.40
codegen_flags: <defaults>
</compile_context>

<pallas_src>
import functools

import jax
import jax.numpy as jnp
from jax.experimental import pallas as pl
from jax.experimental.pallas import tpu as pltpu


def _conv_gn_lrelu_kernel(x_ref, w_ref, gamma_ref, beta_ref, colmask_ref, o_ref,
                          xz_ref, patch_ref,
                          *, W, ks, pad, eps, neg_slope, flat_off):
    # x_ref:       (1, Cin, H*W)        one sample, flattened NCHW (lanes = H*W)
    # w_ref:       (Cout, ks*ks*Cin)    contraction dim ordered (kh, kw, ci)
    # gamma_ref:   (Cout, 1)            GroupNorm affine
    # beta_ref:    (Cout, 1)
    # colmask_ref: (ks, H*W)            0/1 column-validity mask per kernel column
    # o_ref:       (1, Cout, H*W)
    # xz_ref:      (Cin, flat_len)      scratch: flat zero-margined image
    # patch_ref:   (ks*ks*Cin, H*W)     scratch: im2col patches (K on sublanes)
    cin = x_ref.shape[1]
    hw = x_ref.shape[2]

    # ---- flat zero-padded copy of the sample (in-kernel padding) ----
    # Row over/underflow of any tap lands in the zeroed margins == Conv2d zero pad.
    xz_ref[...] = jnp.zeros_like(xz_ref)
    xz_ref[:, flat_off:flat_off + hw] = x_ref[0]

    # ---- im2col: per tap one shifted lane-slice load + a 0/1 column mask ----
    for kh in range(ks):
        for kw in range(ks):
            dh, dw = kh - pad, kw - pad
            s = dh * W + dw                                   # flat lane shift
            xs = xz_ref[:, flat_off + s:flat_off + s + hw]    # (Cin, H*W)
            if kw != pad:                                     # dw != 0: mask column wrap
                xs = xs * colmask_ref[kw:kw + 1, :]
            t = kh * ks + kw
            patch_ref[t * cin:(t + 1) * cin, :] = xs

    # ---- conv: one K-packed matmul on the MXU, lane-dense (Cout, H*W) result ----
    y = jnp.dot(w_ref[...], patch_ref[...],
                preferred_element_type=jnp.float32)           # (Cout, H*W) f32

    # ---- GroupNorm with num_groups == Cout: per-(sample, channel) over H*W ----
    mean = jnp.mean(y, axis=1, keepdims=True)                 # (Cout, 1)
    cen = y - mean
    var = jnp.mean(cen * cen, axis=1, keepdims=True)          # biased, like PyTorch
    y = cen * jax.lax.rsqrt(var + eps)
    y = y * gamma_ref[...] + beta_ref[...]

    # ---- LeakyReLU (default negative_slope = 0.01) ----
    y = jnp.where(y >= 0, y, neg_slope * y)

    o_ref[0] = y.astype(o_ref.dtype)


def conv_block_forward(x_nchw, weight, gamma, beta,
                       *, padding=1, eps=1e-5, neg_slope=0.01):
    """Forward of the PyTorch `Conv` module (stride=1).

    x_nchw : (N, Cin, H, W)       float32
    weight : (Cout, Cin, ks, ks)  float32   (nn.Conv2d layout, bias=False)
    gamma  : (Cout,)              GroupNorm weight
    beta   : (Cout,)              GroupNorm bias
    returns: (N, Cout, H, W)
    """
    n, cin, h, w = x_nchw.shape
    cout, _, ks, _ = weight.shape
    hw = h * w
    kdim = ks * ks * cin

    # NCHW consumed natively: only free reshapes, no activation transpose / pad.
    x_flat = x_nchw.reshape(n, cin, hw)

    # Weight reordered once (tiny) so the packed contraction dim is (kh, kw, ci),
    # matching the order in which the kernel stacks the im2col patches.
    w_packed = jnp.transpose(weight, (0, 2, 3, 1)).reshape(cout, kdim)
    gamma2 = gamma.reshape(cout, 1).astype(jnp.float32)
    beta2 = beta.reshape(cout, 1).astype(jnp.float32)

    # Column-validity masks: row kw is 1.0 where (j + kw - pad) stays inside [0, W).
    col = jnp.tile(jnp.arange(w, dtype=jnp.int32), h)                 # (H*W,)
    colmask = jnp.stack(
        [((col + (kw - padding) >= 0) & (col + (kw - padding) <= w - 1))
         .astype(jnp.float32) for kw in range(ks)], axis=0)           # (ks, H*W)

    flat_off = 128                       # lane-aligned placement inside the scratch
    flat_len = flat_off + hw + 128
    assert flat_off >= padding * w + padding, "flat margin too small for this tap reach"

    kernel = functools.partial(
        _conv_gn_lrelu_kernel, W=w, ks=ks, pad=padding,
        eps=eps, neg_slope=neg_slope, flat_off=flat_off)

    out_flat = pl.pallas_call(
        kernel,
        out_shape=jax.ShapeDtypeStruct((n, cout, hw), x_nchw.dtype),
        grid_spec=pltpu.PrefetchScalarGridSpec(
            num_scalar_prefetch=0,
            grid=(n,),
            in_specs=[
                pl.BlockSpec((1, cin, hw), lambda b: (b, 0, 0)),
                pl.BlockSpec((cout, kdim), lambda b: (0, 0)),
                pl.BlockSpec((cout, 1), lambda b: (0, 0)),
                pl.BlockSpec((cout, 1), lambda b: (0, 0)),
                pl.BlockSpec((ks, hw), lambda b: (0, 0)),
            ],
            out_specs=pl.BlockSpec((1, cout, hw), lambda b: (b, 0, 0)),
            scratch_shapes=[
                pltpu.VMEM((cin, flat_len), jnp.float32),   # flat padded image
                pltpu.VMEM((kdim, hw), jnp.float32),        # im2col patches
            ],
        ),
        compiler_params=pltpu.CompilerParams(
            dimension_semantics=("parallel",),   # N=2 -> one sample per TC on v7x
            vmem_limit_bytes=32 * 1024 * 1024,
        ),
    )(x_flat, w_packed, gamma2, beta2, colmask)

    return out_flat.reshape(n, cout, h, w)       # free reshape back to NCHW


def _reference_forward(x_nchw, weight, gamma, beta,
                       *, padding=1, eps=1e-5, neg_slope=0.01):
    """Pure-JAX reference (XLA conv) for the correctness check."""
    y = jax.lax.conv_general_dilated(
        x_nchw, weight, window_strides=(1, 1),
        padding=[(padding, padding), (padding, padding)],
        dimension_numbers=("NCHW", "OIHW", "NCHW"),
    )
    mean = jnp.mean(y, axis=(2, 3), keepdims=True)
    var = jnp.var(y, axis=(2, 3), keepdims=True)
    yn = (y - mean) * jax.lax.rsqrt(var + eps)
    yn = yn * gamma[None, :, None, None] + beta[None, :, None, None]
    return jnp.where(yn >= 0, yn, neg_slope * yn)


if __name__ == "__main__":
    # Small shapes consistent with the module: batch=2, in_c=4, out_c=8, 16x16.
    N, CIN, COUT, H, W, KS = 2, 4, 8, 16, 16, 3

    key = jax.random.PRNGKey(0)
    kx, kw, kg, kb = jax.random.split(key, 4)

    x = jax.random.normal(kx, (N, CIN, H, W), dtype=jnp.float32)
    fan_in = CIN * KS * KS
    weight = jax.random.uniform(kw, (COUT, CIN, KS, KS), dtype=jnp.float32,
                                minval=-1.0, maxval=1.0) / jnp.sqrt(fan_in)
    gamma = 1.0 + 0.1 * jax.random.normal(kg, (COUT,), dtype=jnp.float32)
    beta = 0.1 * jax.random.normal(kb, (COUT,), dtype=jnp.float32)

    out = conv_block_forward(x, weight, gamma, beta)
    out = jax.block_until_ready(out)

    ref = _reference_forward(x, weight, gamma, beta)
    assert out.shape == (N, COUT, H, W), out.shape
    assert jnp.allclose(out, ref, atol=1e-4, rtol=1e-4), float(
        jnp.max(jnp.abs(out - ref)))

    print("KERNEL_OK")
</pallas_src>

<mosaic_0001>
module attributes {stable_mosaic.version = 11 : i64} {
  func.func @_conv_gn_lrelu_kernel(%arg0: i32, %arg1: memref<1x4x256xf32, #tpu.memory_space<vmem>>, %arg2: memref<8x36xf32, #tpu.memory_space<vmem>>, %arg3: memref<8x1xf32, #tpu.memory_space<vmem>>, %arg4: memref<8x1xf32, #tpu.memory_space<vmem>>, %arg5: memref<3x256xf32, #tpu.memory_space<vmem>>, %arg6: memref<1x8x256xf32, #tpu.memory_space<vmem>>, %arg7: memref<4x512xf32, #tpu.memory_space<vmem>>, %arg8: memref<36x256xf32, #tpu.memory_space<vmem>>) attributes {dimension_semantics = [#tpu.dimension_semantics<parallel>], iteration_bounds = array<i64: 2>, scalar_prefetch = 0 : i64, scratch_operands = 2 : i64, tpu.core_type = #tpu.core_type<tc>, window_params = [{transform_indices = @transform_0, window_bounds = array<i64: 1, 4, 256>}, {pipeline_mode = #tpu.pipeline_mode<synchronous>, transform_indices = @transform_1, window_bounds = array<i64: 8, 36>}, {pipeline_mode = #tpu.pipeline_mode<synchronous>, transform_indices = @transform_2, window_bounds = array<i64: 8, 1>}, {pipeline_mode = #tpu.pipeline_mode<synchronous>, transform_indices = @transform_3, window_bounds = array<i64: 8, 1>}, {pipeline_mode = #tpu.pipeline_mode<synchronous>, transform_indices = @transform_4, window_bounds = array<i64: 3, 256>}, {transform_indices = @transform_5, window_bounds = array<i64: 1, 8, 256>}]} {
    %cst = arith.constant 0.000000e+00 : f32
    %0 = vector.broadcast %cst : f32 to vector<4x512xf32>
    %c0 = arith.constant 0 : index
    %c0_0 = arith.constant 0 : index
    %1 = vector.load %arg7[%c0, %c0_0] : memref<4x512xf32, #tpu.memory_space<vmem>>, vector<4x512xf32>
    tpu.vector_store %arg7[%c0, %c0_0], %0 {strides = array<i32>} : memref<4x512xf32, #tpu.memory_space<vmem>>, vector<4x512xf32>,
    %c0_1 = arith.constant 0 : index
    %c0_2 = arith.constant 0 : index
    %c0_3 = arith.constant 0 : index
    %2 = vector.load %arg1[%c0_1, %c0_2, %c0_3] : memref<1x4x256xf32, #tpu.memory_space<vmem>>, vector<1x4x256xf32>
    %3 = vector.shape_cast %2 : vector<1x4x256xf32> to vector<4x256xf32>
    %c0_4 = arith.constant 0 : index
    %c128 = arith.constant 128 : index
    %4 = vector.load %arg7[%c0_4, %c128] : memref<4x512xf32, #tpu.memory_space<vmem>>, vector<4x256xf32>
    tpu.vector_store %arg7[%c0_4, %c128], %3 {strides = array<i32>} : memref<4x512xf32, #tpu.memory_space<vmem>>, vector<4x256xf32>,
    %c0_5 = arith.constant 0 : index
    %c111 = arith.constant 111 : index
    %5 = vector.load %arg7[%c0_5, %c111] : memref<4x512xf32, #tpu.memory_space<vmem>>, vector<4x256xf32>
    %c0_6 = arith.constant 0 : index
    %c0_7 = arith.constant 0 : index
    %6 = vector.load %arg5[%c0_6, %c0_7] : memref<3x256xf32, #tpu.memory_space<vmem>>, vector<1x256xf32>
    %7 = vector.broadcast %6 : vector<1x256xf32> to vector<4x256xf32>
    %8 = arith.mulf %5, %7 : vector<4x256xf32>
    %c0_8 = arith.constant 0 : index
    %c0_9 = arith.constant 0 : index
    %9 = vector.load %arg8[%c0_8, %c0_9] : memref<36x256xf32, #tpu.memory_space<vmem>>, vector<4x256xf32>
    tpu.vector_store %arg8[%c0_8, %c0_9], %8 {strides = array<i32>} : memref<36x256xf32, #tpu.memory_space<vmem>>, vector<4x256xf32>,
    %c0_10 = arith.constant 0 : index
    %c112 = arith.constant 112 : index
    %10 = vector.load %arg7[%c0_10, %c112] : memref<4x512xf32, #tpu.memory_space<vmem>>, vector<4x256xf32>
    %c4 = arith.constant 4 : index
    %c0_11 = arith.constant 0 : index
    %11 = vector.load %arg8[%c4, %c0_11] : memref<36x256xf32, #tpu.memory_space<vmem>>, vector<4x256xf32>
    tpu.vector_store %arg8[%c4, %c0_11], %10 {strides = array<i32>} : memref<36x256xf32, #tpu.memory_space<vmem>>, vector<4x256xf32>,
    %c0_12 = arith.constant 0 : index
    %c113 = arith.constant 113 : index
    %12 = vector.load %arg7[%c0_12, %c113] : memref<4x512xf32, #tpu.memory_space<vmem>>, vector<4x256xf32>
    %c2 = arith.constant 2 : index
    %c0_13 = arith.constant 0 : index
    %13 = vector.load %arg5[%c2, %c0_13] : memref<3x256xf32, #tpu.memory_space<vmem>>, vector<1x256xf32>
    %14 = vector.broadcast %13 : vector<1x256xf32> to vector<4x256xf32>
    %15 = arith.mulf %12, %14 : vector<4x256xf32>
    %c8 = arith.constant 8 : index
    %c0_14 = arith.constant 0 : index
    %16 = vector.load %arg8[%c8, %c0_14] : memref<36x256xf32, #tpu.memory_space<vmem>>, vector<4x256xf32>
    tpu.vector_store %arg8[%c8, %c0_14], %15 {strides = array<i32>} : memref<36x256xf32, #tpu.memory_space<vmem>>, vector<4x256xf32>,
    %c0_15 = arith.constant 0 : index
    %c127 = arith.constant 127 : index
    %17 = vector.load %arg7[%c0_15, %c127] : memref<4x512xf32, #tpu.memory_space<vmem>>, vector<4x256xf32>
    %c0_16 = arith.constant 0 : index
    %c0_17 = arith.constant 0 : index
    %18 = vector.load %arg5[%c0_16, %c0_17] : memref<3x256xf32, #tpu.memory_space<vmem>>, vector<1x256xf32>
    %19 = vector.broadcast %18 : vector<1x256xf32> to vector<4x256xf32>
    %20 = arith.mulf %17, %19 : vector<4x256xf32>
    %c12 = arith.constant 12 : index
    %c0_18 = arith.constant 0 : index
    %21 = vector.load %arg8[%c12, %c0_18] : memref<36x256xf32, #tpu.memory_space<vmem>>, vector<4x256xf32>
    tpu.vector_store %arg8[%c12, %c0_18], %20 {strides = array<i32>} : memref<36x256xf32, #tpu.memory_space<vmem>>, vector<4x256xf32>,
    %c0_19 = arith.constant 0 : index
    %c128_20 = arith.constant 128 : index
    %22 = vector.load %arg7[%c0_19, %c128_20] : memref<4x512xf32, #tpu.memory_space<vmem>>, vector<4x256xf32>
    %c16 = arith.constant 16 : index
    %c0_21 = arith.constant 0 : index
    %23 = vector.load %arg8[%c16, %c0_21] : memref<36x256xf32, #tpu.memory_space<vmem>>, vector<4x256xf32>
    tpu.vector_store %arg8[%c16, %c0_21], %22 {strides = array<i32>} : memref<36x256xf32, #tpu.memory_space<vmem>>, vector<4x256xf32>,
    %c0_22 = arith.constant 0 : index
    %c129 = arith.constant 129 : index
    %24 = vector.load %arg7[%c0_22, %c129] : memref<4x512xf32, #tpu.memory_space<vmem>>, vector<4x256xf32>
    %c2_23 = arith.constant 2 : index
    %c0_24 = arith.constant 0 : index
    %25 = vector.load %arg5[%c2_23, %c0_24] : memref<3x256xf32, #tpu.memory_space<vmem>>, vector<1x256xf32>
    %26 = vector.broadcast %25 : vector<1x256xf32> to vector<4x256xf32>
    %27 = arith.mulf %24, %26 : vector<4x256xf32>
    %c20 = arith.constant 20 : index
    %c0_25 = arith.constant 0 : index
    %28 = vector.load %arg8[%c20, %c0_25] : memref<36x256xf32, #tpu.memory_space<vmem>>, vector<4x256xf32>
    tpu.vector_store %arg8[%c20, %c0_25], %27 {strides = array<i32>} : memref<36x256xf32, #tpu.memory_space<vmem>>, vector<4x256xf32>,
    %c0_26 = arith.constant 0 : index
    %c143 = arith.constant 143 : index
    %29 = vector.load %arg7[%c0_26, %c143] : memref<4x512xf32, #tpu.memory_space<vmem>>, vector<4x256xf32>
    %c0_27 = arith.constant 0 : index
    %c0_28 = arith.constant 0 : index
    %30 = vector.load %arg5[%c0_27, %c0_28] : memref<3x256xf32, #tpu.memory_space<vmem>>, vector<1x256xf32>
    %31 = vector.broadcast %30 : vector<1x256xf32> to vector<4x256xf32>
    %32 = arith.mulf %29, %31 : vector<4x256xf32>
    %c24 = arith.constant 24 : index
    %c0_29 = arith.constant 0 : index
    %33 = vector.load %arg8[%c24, %c0_29] : memref<36x256xf32, #tpu.memory_space<vmem>>, vector<4x256xf32>
    tpu.vector_store %arg8[%c24, %c0_29], %32 {strides = array<i32>} : memref<36x256xf32, #tpu.memory_space<vmem>>, vector<4x256xf32>,
    %c0_30 = arith.constant 0 : index
    %c144 = arith.constant 144 : index
    %34 = vector.load %arg7[%c0_30, %c144] : memref<4x512xf32, #tpu.memory_space<vmem>>, vector<4x256xf32>
    %c28 = arith.constant 28 : index
    %c0_31 = arith.constant 0 : index
    %35 = vector.load %arg8[%c28, %c0_31] : memref<36x256xf32, #tpu.memory_space<vmem>>, vector<4x256xf32>
    tpu.vector_store %arg8[%c28, %c0_31], %34 {strides = array<i32>} : memref<36x256xf32, #tpu.memory_space<vmem>>, vector<4x256xf32>,
    %c0_32 = arith.constant 0 : index
    %c145 = arith.constant 145 : index
    %36 = vector.load %arg7[%c0_32, %c145] : memref<4x512xf32, #tpu.memory_space<vmem>>, vector<4x256xf32>
    %c2_33 = arith.constant 2 : index
    %c0_34 = arith.constant 0 : index
    %37 = vector.load %arg5[%c2_33, %c0_34] : memref<3x256xf32, #tpu.memory_space<vmem>>, vector<1x256xf32>
    %38 = vector.broadcast %37 : vector<1x256xf32> to vector<4x256xf32>
    %39 = arith.mulf %36, %38 : vector<4x256xf32>
    %c32 = arith.constant 32 : index
    %c0_35 = arith.constant 0 : index
    %40 = vector.load %arg8[%c32, %c0_35] : memref<36x256xf32, #tpu.memory_space<vmem>>, vector<4x256xf32>
    tpu.vector_store %arg8[%c32, %c0_35], %39 {strides = array<i32>} : memref<36x256xf32, #tpu.memory_space<vmem>>, vector<4x256xf32>,
    %c0_36 = arith.constant 0 : index
    %c0_37 = arith.constant 0 : index
    %41 = vector.load %arg2[%c0_36, %c0_37] : memref<8x36xf32, #tpu.memory_space<vmem>>, vector<8x36xf32>
    %c0_38 = arith.constant 0 : index
    %c0_39 = arith.constant 0 : index
    %42 = vector.load %arg8[%c0_38, %c0_39] : memref<36x256xf32, #tpu.memory_space<vmem>>, vector<36x256xf32>
    %cst_40 = arith.constant dense<0.000000e+00> : vector<8x256xf32>
    %43 = tpu.matmul %41, %42, %cst_40 {dimension_numbers = #tpu.dot_dimension_numbers<[1], [0], [0], [1], [0, 0, 1, 1], [], []>} : vector<8x36xf32>, vector<36x256xf32>, vector<8x256xf32> -> vector<8x256xf32>
    %cst_41 = arith.constant dense<0.000000e+00> : vector<8xf32>
    %44 = vector.multi_reduction <add>, %43, %cst_41 [1] : vector<8x256xf32> to vector<8xf32>
    %45 = vector.shape_cast %44 : vector<8xf32> to vector<8x1xf32>
    %cst_42 = arith.constant 2.560000e+02 : f32
    %46 = vector.broadcast %cst_42 : f32 to vector<8x1xf32>
    %47 = arith.divf %45, %46 : vector<8x1xf32>
    %48 = vector.broadcast %47 : vector<8x1xf32> to vector<8x256xf32>
    %49 = arith.subf %43, %48 : vector<8x256xf32>
    %50 = arith.mulf %49, %49 : vector<8x256xf32>
    %cst_43 = arith.constant dense<0.000000e+00> : vector<8xf32>
    %51 = vector.multi_reduction <add>, %50, %cst_43 [1] : vector<8x256xf32> to vector<8xf32>
    %52 = vector.shape_cast %51 : vector<8xf32> to vector<8x1xf32>
    %cst_44 = arith.constant 2.560000e+02 : f32
    %53 = vector.broadcast %cst_44 : f32 to vector<8x1xf32>
    %54 = arith.divf %52, %53 : vector<8x1xf32>
    %cst_45 = arith.constant 9.99999974E-6 : f32
    %55 = vector.broadcast %cst_45 : f32 to vector<8x1xf32>
    %56 = arith.addf %54, %55 : vector<8x1xf32>
    %57 = math.rsqrt %56 : vector<8x1xf32>
    %58 = vector.broadcast %57 : vector<8x1xf32> to vector<8x256xf32>
    %59 = arith.mulf %49, %58 : vector<8x256xf32>
    %c0_46 = arith.constant 0 : index
    %c0_47 = arith.constant 0 : index
    %60 = vector.load %arg3[%c0_46, %c0_47] : memref<8x1xf32, #tpu.memory_space<vmem>>, vector<8x1xf32>
    %61 = vector.broadcast %60 : vector<8x1xf32> to vector<8x256xf32>
    %62 = arith.mulf %59, %61 : vector<8x256xf32>
    %c0_48 = arith.constant 0 : index
    %c0_49 = arith.constant 0 : index
    %63 = vector.load %arg4[%c0_48, %c0_49] : memref<8x1xf32, #tpu.memory_space<vmem>>, vector<8x1xf32>
    %64 = vector.broadcast %63 : vector<8x1xf32> to vector<8x256xf32>
    %65 = arith.addf %62, %64 : vector<8x256xf32>
    %cst_50 = arith.constant 0.000000e+00 : f32
    %66 = vector.broadcast %cst_50 : f32 to vector<8x256xf32>
    %67 = arith.cmpf oge, %65, %66 : vector<8x256xf32>
    %cst_51 = arith.constant 0.00999999977 : f32
    %68 = vector.broadcast %cst_51 : f32 to vector<8x256xf32>
    %69 = arith.mulf %68, %65 : vector<8x256xf32>
    %70 = arith.select %67, %65, %69 : vector<8x256xi1>, vector<8x256xf32>
    %c0_52 = arith.constant 0 : index
    %c0_53 = arith.constant 0 : index
    %c0_54 = arith.constant 0 : index
    %71 = vector.load %arg6[%c0_52, %c0_53, %c0_54] : memref<1x8x256xf32, #tpu.memory_space<vmem>>, vector<1x8x256xf32>
    %72 = vector.shape_cast %71 : vector<1x8x256xf32> to vector<8x256xf32>
    %73 = vector.shape_cast %70 : vector<8x256xf32> to vector<1x8x256xf32>
    tpu.vector_store %arg6[%c0_52, %c0_53, %c0_54], %73 {strides = array<i32>} : memref<1x8x256xf32, #tpu.memory_space<vmem>>, vector<1x8x256xf32>,
    return
  }
  func.func @transform_0(%arg0: i32) -> (i32, i32, i32) {
    %c0_i32 = arith.constant 0 : i32
    %c0_i32_0 = arith.constant 0 : i32
    %c0_i32_1 = arith.constant 0 : i32
    return %arg0, %c0_i32, %c0_i32_0 : i32, i32, i32
  }
  func.func @transform_1(%arg0: i32) -> (i32, i32) {
    %c0_i32 = arith.constant 0 : i32
    %c0_i32_0 = arith.constant 0 : i32
    %c0_i32_1 = arith.constant 0 : i32
    return %c0_i32, %c0_i32_0 : i32, i32
  }
  func.func @transform_2(%arg0: i32) -> (i32, i32) {
    %c0_i32 = arith.constant 0 : i32
    %c0_i32_0 = arith.constant 0 : i32
    %c0_i32_1 = arith.constant 0 : i32
    return %c0_i32, %c0_i32_0 : i32, i32
  }
  func.func @transform_3(%arg0: i32) -> (i32, i32) {
    %c0_i32 = arith.constant 0 : i32
    %c0_i32_0 = arith.constant 0 : i32
    %c0_i32_1 = arith.constant 0 : i32
    return %c0_i32, %c0_i32_0 : i32, i32
  }
  func.func @transform_4(%arg0: i32) -> (i32, i32) {
    %c0_i32 = arith.constant 0 : i32
    %c0_i32_0 = arith.constant 0 : i32
    %c0_i32_1 = arith.constant 0 : i32
    return %c0_i32, %c0_i32_0 : i32, i32
  }
  func.func @transform_5(%arg0: i32) -> (i32, i32, i32) {
    %c0_i32 = arith.constant 0 : i32
    %c0_i32_0 = arith.constant 0 : i32
    %c0_i32_1 = arith.constant 0 : i32
    return %arg0, %c0_i32, %c0_i32_0 : i32, i32, i32
  }
}

</mosaic_0001>

<llo_original>
// kernel: tpu_custom_call.1
$region0: #{tpu_custom_call.1}
  #allocation0 [shape = 'u32[]', space=smem, size = 0x4, offset = 0x4, fixed_abs, tag = 'smem constant byte address 0x4 - core index']
  #allocation1 [shape = 'u32[144,128]{1,0:T(1,128)}', space=vmem, size = 0x12000, scoped, tag = 'internal scratch']
  #allocation2 [shape = 'f32[4,512]{1,0:T(4,128)}', space=vmem, size = 0x2000, scoped, tag = 'scratch operand']
  #allocation3 [shape = 'f32[36,256]{1,0:T(8,128)}', space=vmem, size = 0xa000, scoped, tag = 'scratch operand']
  %s0 = inlined_call_operand.vmem [shape: f32[2,4,256], index: 0, kind: input, shape index: {}]
  %s1 = inlined_call_operand.hbm [shape: f32[8,36], index: 1, kind: input, shape index: {}]
  %s2 = inlined_call_operand.vmem [shape: f32[8,1], index: 2, kind: input, shape index: {}]
  %s3 = inlined_call_operand.vmem [shape: f32[8,1], index: 3, kind: input, shape index: {}]
  %s4 = inlined_call_operand.vmem [shape: f32[3,256], index: 4, kind: input, shape index: {}]
  %s5 = inlined_call_operand.hbm [shape: f32[2,8,256], index: 5, kind: output, shape index: {}]
  %s6 = sld [smem:[#allocation0]]
  $region57: #{tpu_custom_call.1} parent=0
    _
  %s8 = ssub.s32 1, %s6
  %s9 = scalar_select 0, %s8, %s6
  $region1: #{tpu_custom_call.1} parent=0
    #allocation4 [shape = 'u8[4096]{0}', space=vmem, size = 0x1000, scoped, tag = 'input window, operand 1, single buffered']
    #allocation5 [shape = 's32[2]{0}', space=sflag, size = 0x8, scoped, tag = 'scoped memory for tpu_custom_call.1']
    #allocation6 [shape = 's32[2]{0}', space=sflag, size = 0x8, scoped, tag = 'scoped memory for tpu_custom_call.1']
    #allocation7 [shape = 'u8[16384]{0}', space=vmem, size = 0x4000, scoped, tag = 'output window, operand 0']
    %10 = vsyncpa [#allocation5], 0
    %11 = vsyncpa [#allocation6], 0
    %s12 = scalar_lea.sflag [#allocation6], 1
    %13 = vsyncpa %s12, 0
    loop: start=0, step=1, limit=4
    $region2: #{tpu_custom_call.1} parent=1 // loop_pre_header
      _
    $region3: #{tpu_custom_call.1} parent=1 // loop_header
      %s15 = sphi 0, %s19
      %p16 = scmp.ge.s32.totalorder %s15, 4
      %s25 = sphi 0, %s27
      %s28 = sphi 0, %s25
      %s29 = sphi 0, %s28
      %s45 = sphi 0, %s29
      %s49 = sphi 0, %s49
      %s51 = sphi 0, %s49
      %s52 = sphi 0, %s51
      %s66 = sphi 0, %s52
      %s70 = sphi 0, %s70
      %s72 = sphi 0, %s70
      %s73 = sphi 0, %s72
      %s87 = sphi 0, %s73
      %s91 = sphi 0, %s91
      %s93 = sphi 0, %s91
      %s94 = sphi 0, %s93
      %s108 = sphi 0, %s94
      %s112 = sphi 0, %s112
      %s114 = sphi 0, %s112
      %s115 = sphi 0, %s114
      %s129 = sphi 0, %s115
      %s135 = sphi 0, %s137
      %s138 = sphi 0, %s135
      %s139 = sphi 0, %s138
      %s155 = sphi 0, %s139
    $region4: #{tpu_custom_call.1} parent=1 // loop_header_branch
      %18 = sbr.rel (%p16) target = $region8
    $region5: #{tpu_custom_call.1} parent=1 // loop_body
      %s20 = ssub.s32 %s15, 1
      %s21 = ssub.s32 %s15, 2
      %s22 = sadd.s32 %s15, 1
      %s23 = ssub.s32 %s15, %s22
      %p24 = scmp.eq.s32.totalorder %s23, 0
      %s26 = sadd.s32 %s25, 1
      %s27 = scalar_select %p24, %s25, %s26
      %p30 = pneg %p24
      %p31 = scmp.eq.s32.totalorder %s15, 1
      %p32 = por %p30, %p31
      %p33 = scmp.ne.s32.totalorder %s25, %s28
      %p34 = scmp.eq.s32.totalorder %s15, 0
      %p35 = por %p33, %p34
      %p36 = scmp.ne.s32.totalorder %s25, %s28
      %p37 = scmp.eq.s32.totalorder %s20, 1
      %p38 = por %p36, %p37
      %p39 = scmp.ne.s32.totalorder %s28, %s29
      %p40 = scmp.eq.s32.totalorder %s20, 0
      %p41 = por %p39, %p40
      %p42 = scmp.ne.s32.totalorder %s28, %s29
      %p43 = scmp.eq.s32.totalorder %s21, 1
      %p44 = por %p42, %p43
      %p46 = scmp.ne.s32.totalorder %s29, %s45
      %p47 = scmp.eq.s32.totalorder %s21, 0
      %p48 = por %p46, %p47
      %s50 = sadd.s32 %s49, 1
      %p53 = scmp.eq.s32.totalorder %s15, 1
      %p54 = scmp.ne.s32.totalorder %s49, %s51
      %p55 = scmp.eq.s32.totalorder %s15, 0
      %p56 = por %p54, %p55
      %p57 = scmp.ne.s32.totalorder %s49, %s51
      %p58 = scmp.eq.s32.totalorder %s20, 1
      %p59 = por %p57, %p58
      %p60 = scmp.ne.s32.totalorder %s51, %s52
      %p61 = scmp.eq.s32.totalorder %s20, 0
      %p62 = por %p60, %p61
      %p63 = scmp.ne.s32.totalorder %s51, %s52
      %p64 = scmp.eq.s32.totalorder %s21, 1
      %p65 = por %p63, %p64
      %p67 = scmp.ne.s32.totalorder %s52, %s66
      %p68 = scmp.eq.s32.totalorder %s21, 0
      %p69 = por %p67, %p68
      %s71 = sadd.s32 %s70, 1
      %p74 = scmp.eq.s32.totalorder %s15, 1
      %p75 = scmp.ne.s32.totalorder %s70, %s72
      %p76 = scmp.eq.s32.totalorder %s15, 0
      %p77 = por %p75, %p76
      %p78 = scmp.ne.s32.totalorder %s70, %s72
      %p79 = scmp.eq.s32.totalorder %s20, 1
      %p80 = por %p78, %p79
      %p81 = scmp.ne.s32.totalorder %s72, %s73
      %p82 = scmp.eq.s32.totalorder %s20, 0
      %p83 = por %p81, %p82
      %p84 = scmp.ne.s32.totalorder %s72, %s73
      %p85 = scmp.eq.s32.totalorder %s21, 1
      %p86 = por %p84, %p85
      %p88 = scmp.ne.s32.totalorder %s73, %s87
      %p89 = scmp.eq.s32.totalorder %s21, 0
      %p90 = por %p88, %p89
      %s92 = sadd.s32 %s91, 1
      %p95 = scmp.eq.s32.totalorder %s15, 1
      %p96 = scmp.ne.s32.totalorder %s91, %s93
      %p97 = scmp.eq.s32.totalorder %s15, 0
      %p98 = por %p96, %p97
      %p99 = scmp.ne.s32.totalorder %s91, %s93
      %p100 = scmp.eq.s32.totalorder %s20, 1
      %p101 = por %p99, %p100
      %p102 = scmp.ne.s32.totalorder %s93, %s94
      %p103 = scmp.eq.s32.totalorder %s20, 0
      %p104 = por %p102, %p103
      %p105 = scmp.ne.s32.totalorder %s93, %s94
      %p106 = scmp.eq.s32.totalorder %s21, 1
      %p107 = por %p105, %p106
      %p109 = scmp.ne.s32.totalorder %s94, %s108
      %p110 = scmp.eq.s32.totalorder %s21, 0
      %p111 = por %p109, %p110
      %s113 = sadd.s32 %s112, 1
      %p116 = scmp.eq.s32.totalorder %s15, 1
      %p117 = scmp.ne.s32.totalorder %s112, %s114
      %p118 = scmp.eq.s32.totalorder %s15, 0
      %p119 = por %p117, %p118
      %p120 = scmp.ne.s32.totalorder %s112, %s114
      %p121 = scmp.eq.s32.totalorder %s20, 1
      %p122 = por %p120, %p121
      %p123 = scmp.ne.s32.totalorder %s114, %s115
      %p124 = scmp.eq.s32.totalorder %s20, 0
      %p125 = por %p123, %p124
      %p126 = scmp.ne.s32.totalorder %s114, %s115
      %p127 = scmp.eq.s32.totalorder %s21, 1
      %p128 = por %p126, %p127
      %p130 = scmp.ne.s32.totalorder %s115, %s129
      %p131 = scmp.eq.s32.totalorder %s21, 0
      %p132 = por %p130, %p131
      %s133 = ssub.s32 %s15, %s22
      %p134 = scmp.eq.s32.totalorder %s133, 0
      %s136 = sadd.s32 %s135, 1
      %s137 = scalar_select %p134, %s135, %s136
      %p140 = pneg %p134
      %p141 = scmp.eq.s32.totalorder %s15, 1
      %p142 = por %p140, %p141
      %p143 = scmp.ne.s32.totalorder %s135, %s138
      %p144 = scmp.eq.s32.totalorder %s15, 0
      %p145 = por %p143, %p144
      %p146 = scmp.ne.s32.totalorder %s135, %s138
      %p147 = scmp.eq.s32.totalorder %s20, 1
      %p148 = por %p146, %p147
      %p149 = scmp.ne.s32.totalorder %s138, %s139
      %p150 = scmp.eq.s32.totalorder %s20, 0
      %p151 = por %p149, %p150
      %p152 = scmp.ne.s32.totalorder %s138, %s139
      %p153 = scmp.eq.s32.totalorder %s21, 1
      %p154 = por %p152, %p153
      %p156 = scmp.ne.s32.totalorder %s139, %s155
      %p157 = scmp.eq.s32.totalorder %s21, 0
      %p158 = por %p156, %p157
      %p159 = scmp.le.s32.totalorder 1, %s15
      %p160 = scmp.lt.s32.totalorder %s15, 3
      %p161 = pnand %p159, %p160
      %p162 = pneg %p161
      // Predicated region
      $region9: #{tpu_custom_call.1} parent=5 // pred_check
        _
      $region10: #{tpu_custom_call.1} parent=5 // pred_check_branch
        %164 = sbr.rel (%p161) target = $region12
      $region11: #{tpu_custom_call.1} parent=5 // pred_region
        %s165 = ssub.s32 %s15, 1
        // Predicated region
        $region13: #{tpu_custom_call.1} parent=11 // pred_check
          %p166 = pneg %p62
        $region14: #{tpu_custom_call.1} parent=11 // pred_check_branch
          %168 = sbr.rel (%p166) target = $region16
        $region15: #{tpu_custom_call.1} parent=11 // pred_region
          %s170 = ssub.s32 128, 128
          %171 = vsyncadd [#allocation5], %s170
          %s173 = sshll.u32 [#allocation4], 4
          %s174 = int_to_ptr.vmem [resolvable:$true] %s173
          %176 = dma.hbm_to_vmem [thread:$0]  %s1, 128, %s174, [#allocation5]
        $region16: #{tpu_custom_call.1} parent=11 // pred_fallthru
          _
        // Predicated region
        $region17: #{tpu_custom_call.1} parent=11 // pred_check
          %p177 = pneg %p83
        $region18: #{tpu_custom_call.1} parent=11 // pred_check_branch
          %179 = sbr.rel (%p177) target = $region20
        $region19: #{tpu_custom_call.1} parent=11 // pred_region
          _
        $region20: #{tpu_custom_call.1} parent=11 // pred_fallthru
          _
        // Predicated region
        $region21: #{tpu_custom_call.1} parent=11 // pred_check
          %p180 = pneg %p104
        $region22: #{tpu_custom_call.1} parent=11 // pred_check_branch
          %182 = sbr.rel (%p180) target = $region24
        $region23: #{tpu_custom_call.1} parent=11 // pred_region
          _
        $region24: #{tpu_custom_call.1} parent=11 // pred_fallthru
          _
        // Predicated region
        $region25: #{tpu_custom_call.1} parent=11 // pred_check
          %p183 = pneg %p125
        $region26: #{tpu_custom_call.1} parent=11 // pred_check_branch
          %185 = sbr.rel (%p183) target = $region28
        $region27: #{tpu_custom_call.1} parent=11 // pred_region
          _
        $region28: #{tpu_custom_call.1} parent=11 // pred_fallthru
          _
      $region12: #{tpu_custom_call.1} parent=5 // pred_fallthru
        _
      %p186 = scmp.lt.s32.totalorder %s15, 2
      // Predicated region
      $region29: #{tpu_custom_call.1} parent=5 // pred_check
        %p187 = pneg %p186
      $region30: #{tpu_custom_call.1} parent=5 // pred_check_branch
        %189 = sbr.rel (%p187) target = $region32
      $region31: #{tpu_custom_call.1} parent=5 // pred_region
        // Predicated region
        $region33: #{tpu_custom_call.1} parent=31 // pred_check
          %p190 = pneg %p35
        $region34: #{tpu_custom_call.1} parent=31 // pred_check_branch
          %192 = sbr.rel (%p190) target = $region36
        $region35: #{tpu_custom_call.1} parent=31 // pred_region
          %p193 = scmp.lt.s32.totalorder %s15, 1
          %s194 = scalar_select %p193, %s15, 1
          %s195 = smul.addr %s194, 2
          %s196 = smul.addr %s195, 4
          %s197 = scalar_lea.vmem %s0, %s196
        $region36: #{tpu_custom_call.1} parent=31 // pred_fallthru
          _
      $region32: #{tpu_custom_call.1} parent=5 // pred_fallthru
        _
      %p198 = scmp.le.s32.totalorder 1, %s15
      %p199 = scmp.lt.s32.totalorder %s15, 3
      %p200 = pnand %p198, %p199
      %p201 = pneg %p200
      // Predicated region
      $region37: #{tpu_custom_call.1} parent=5 // pred_check
        _
      $region38: #{tpu_custom_call.1} parent=5 // pred_check_branch
        %203 = sbr.rel (%p200) target = $region40
      $region39: #{tpu_custom_call.1} parent=5 // pred_region
        %s204 = ssub.s32 %s15, 1
        // Predicated region
        $region41: #{tpu_custom_call.1} parent=39 // pred_check
          %p205 = pneg %p62
        $region42: #{tpu_custom_call.1} parent=39 // pred_check_branch
          %207 = sbr.rel (%p205) target = $region44
        $region43: #{tpu_custom_call.1} parent=39 // pred_region
          %208 = dma.done [#allocation5], 128
        $region44: #{tpu_custom_call.1} parent=39 // pred_fallthru
          _
        %p209 = scmp.lt.s32.totalorder %s20, 1
        %s210 = scalar_select %p209, %s20, 1
        %s211 = smul.addr %s210, 2
        %s212 = smul.addr %s211, 4
        %s213 = scalar_lea.vmem %s0, %s212
        %p214 = pneg %p41
        %p215 = pneg %p38
        %p216 = pneg %p62
        %p217 = pneg %p59
        %p218 = pneg %p83
        %p219 = pneg %p80
        %p220 = pneg %p104
        %p221 = pneg %p101
        %p222 = pneg %p125
        %p223 = pneg %p122
        %p224 = pneg %p151
        %p225 = pneg %p148
        %s226 = sand.u32 %s138, 1
        %s227 = scalar_lea.sflag [#allocation6], %s226
        %s228 = sand.u32 %s138, 1
        %s229 = smul.addr %s228, 16
        %s230 = scalar_lea.vmem [#allocation7], %s229
        %p231 = scmp.lt.s32.totalorder %s20, 1
        %s232 = scalar_select %p231, %s20, 1
        %s233 = smul.addr %s232, 2
        %s234 = smul.addr %s233, 4
        %s235 = scalar_lea.vmem %s0, %s234
        %236 = vst [vmem:[#allocation2] sm:$0xff] 0.0
        %237 = vst [vmem:[#allocation2 + $0x8] sm:$0xff] 0.0
        %v238 = vld [vmem:[%s235] sm:$0xff]
        %239 = vst [vmem:[#allocation2 + $0x4] sm:$0xff] %v238
        %v240 = vld [vmem:[#allocation2] sm:$0xff]
        %v241 = vld [vmem:[#allocation2 + $0x8] sm:$0xf]
        %v242 = vld [vmem:[%s4] ss:$4 sm:$0x3]
        %v244 = vlaneseq
        %v245 = vshrl.u32 %v244, 7
        %v246 = vsub.s32 0, %v245
        %v247 = vrot.slane %v242, %v246
        %v248 = vlaneseq
        %v249 = vshrl.u32 %v248, 7
        %v250 = vsub.s32 1, %v249
        %v251 = vrot.slane %v242, %v250
        %v252 = vcombine.low %v247, %v251
        %253 = vrot.lane.b32.xlu0 %v252, 111
        %v254 = vpop.permute.xlu0 %253
        %v255 = vrot.slane %v254, 4
        %vm256 = vcmask 908288
        %v257 = vsel %vm256, %v255, %v254
        %v260 = vmul.f32 %v240, %v257
        %v261 = vmul.f32 %v241, %v255
        %v264 = vcombine.high %v260, %v260
        %265 = vrot.lane.b32.xlu0 %v260, 17
        %v266 = vpop.permute.xlu0 %265
        %267 = vrot.lane.b32.xlu0 %v264, 17
        %v268 = vpop.permute.xlu0 %267
        %269 = vrot.lane.b32.xlu0 %v261, 17
        %v270 = vpop.permute.xlu0 %269
        %vm271 = vcmask 138240
        %v272 = vsel %vm271, %v266, %v268
        %v273 = vsel %vm271, %v268, %v270
        %276 = vst [vmem:[#allocation3] sm:$0xf] %v272
        %277 = vst [vmem:[#allocation3 + $0x8] sm:$0xf] %v273
        %v278 = vld [vmem:[#allocation2] sm:$0xff]
        %v279 = vld [vmem:[#allocation2 + $0x8] sm:$0xf]
        %v282 = vcombine.low %v278, %v278
        %v283 = vcombine.low %v279, %v279
        %284 = vrot.lane.b32.xlu0 %v282, 16
        %v285 = vpop.permute.xlu0 %284
        %286 = vrot.lane.b32.xlu0 %v278, 16
        %v287 = vpop.permute.xlu0 %286
        %288 = vrot.lane.b32.xlu0 %v283, 16
        %v289 = vpop.permute.xlu0 %288
        %vm290 = vcmask 130048
        %v291 = vsel %vm290, %v285, %v287
        %v292 = vsel %vm290, %v287, %v289
        %295 = vst [vmem:[#allocation3] sm:$0xf0] %v291
        %296 = vst [vmem:[#allocation3 + $0x8] sm:$0xf0] %v292
        %v297 = vld [vmem:[#allocation2] sm:$0xff]
        %v298 = vld [vmem:[#allocation2 + $0x8] sm:$0xf]
        %s299 = scalar_lea.vmem %s4, 2
        %v300 = vld [vmem:[%s299] ss:$4 sm:$0x3]
        %v302 = vlaneseq
        %v303 = vshrl.u32 %v302, 7
        %v304 = vsub.s32 0, %v303
        %v305 = vrot.slane %v300, %v304
        %v306 = vlaneseq
        %v307 = vshrl.u32 %v306, 7
        %v308 = vsub.s32 1, %v307
        %v309 = vrot.slane %v300, %v308
        %v310 = vcombine.low %v305, %v309
        %311 = vrot.lane.b32.xlu0 %v310, 113
        %v312 = vpop.permute.xlu0 %311
        %v313 = vrot.slane %v312, 4
        %vm314 = vcmask 924672
        %v315 = vsel %vm314, %v313, %v312
        %v318 = vmul.f32 %v297, %v315
        %v319 = vmul.f32 %v298, %v313
        %v322 = vcombine.high %v318, %v318
        %323 = vrot.lane.b32.xlu0 %v318, 15
        %v324 = vpop.permute.xlu0 %323
        %325 = vrot.lane.b32.xlu0 %v322, 15
        %v326 = vpop.permute.xlu0 %325
        %327 = vrot.lane.b32.xlu0 %v319, 15
        %v328 = vpop.permute.xlu0 %327
        %vm329 = vcmask 121856
        %v330 = vsel %vm329, %v324, %v326
        %v331 = vsel %vm329, %v326, %v328
        %334 = vst [vmem:[#allocation3 + $0x10] sm:$0xf] %v330
        %335 = vst [vmem:[#allocation3 + $0x18] sm:$0xf] %v331
        %v336 = vld [vmem:[#allocation2] sm:$0xff]
        %v337 = vld [vmem:[#allocation2 + $0x8] sm:$0xf]
        %v338 = vld [vmem:[%s4] ss:$4 sm:$0x3]
        %v340 = vlaneseq
        %v341 = vshrl.u32 %v340, 7
        %v342 = vsub.s32 0, %v341
        %v343 = vrot.slane %v338, %v342
        %v344 = vlaneseq
        %v345 = vshrl.u32 %v344, 7
        %v346 = vsub.s32 1, %v345
        %v347 = vrot.slane %v338, %v346
        %v348 = vcombine.low %v343, %v347
        %349 = vrot.lane.b32.xlu0 %v348, 127
        %v350 = vpop.permute.xlu0 %349
        %v351 = vrot.slane %v350, 4
        %vm352 = vcmask 1039360
        %v353 = vsel %vm352, %v351, %v350
        %v356 = vmul.f32 %v336, %v353
        %v357 = vmul.f32 %v337, %v351
        %v360 = vcombine.low %v356, %v356
        %v361 = vcombine.low %v357, %v357
        %362 = vrot.lane.b32.xlu0 %v360, 1
        %v363 = vpop.permute.xlu0 %362
        %364 = vrot.lane.b32.xlu0 %v356, 1
        %v365 = vpop.permute.xlu0 %364
        %366 = vrot.lane.b32.xlu0 %v361, 1
        %v367 = vpop.permute.xlu0 %366
        %vm368 = vcmask 7168
        %v369 = vsel %vm368, %v363, %v365
        %v370 = vsel %vm368, %v365, %v367
        %373 = vst [vmem:[#allocation3 + $0x10] sm:$0xf0] %v369
        %374 = vst [vmem:[#allocation3 + $0x18] sm:$0xf0] %v370
        %v375 = vld [vmem:[#allocation2 + $0x4] sm:$0xff]
        %v377 = vcombine.high %v375, %v375
        %379 = vst [vmem:[#allocation3 + $0x20] sm:$0xf] %v375
        %380 = vst [vmem:[#allocation3 + $0x28] sm:$0xf] %v377
        %v381 = vld [vmem:[#allocation2 + $0x4] sm:$0xff]
        %v382 = vld [vmem:[#allocation2 + $0xc] sm:$0xf]
        %v383 = vld [vmem:[%s299] ss:$4 sm:$0x3]
        %v385 = vlaneseq
        %v386 = vshrl.u32 %v385, 7
        %v387 = vsub.s32 0, %v386
        %v388 = vrot.slane %v383, %v387
        %v389 = vlaneseq
        %v390 = vshrl.u32 %v389, 7
        %v391 = vsub.s32 1, %v390
        %v392 = vrot.slane %v383, %v391
        %v393 = vcombine.low %v388, %v392
        %394 = vrot.lane.b32.xlu0 %v393, 1
        %v395 = vpop.permute.xlu0 %394
        %v396 = vrot.slane %v395, 4
        %v397 = vsel %vm368, %v396, %v395
        %v400 = vmul.f32 %v381, %v397
        %v401 = vmul.f32 %v382, %v396
        %v404 = vcombine.low %v400, %v400
        %v405 = vcombine.low %v401, %v401
        %406 = vrot.lane.b32.xlu0 %v404, 127
        %v407 = vpop.permute.xlu0 %406
        %408 = vrot.lane.b32.xlu0 %v400, 127
        %v409 = vpop.permute.xlu0 %408
        %410 = vrot.lane.b32.xlu0 %v405, 127
        %v411 = vpop.permute.xlu0 %410
        %v412 = vsel %vm352, %v407, %v409
        %v413 = vsel %vm352, %v409, %v411
        %416 = vst [vmem:[#allocation3 + $0x20] sm:$0xf0] %v412
        %417 = vst [vmem:[#allocation3 + $0x28] sm:$0xf0] %v413
        %v418 = vld [vmem:[#allocation2 + $0x4] sm:$0xff]
        %v419 = vld [vmem:[#allocation2 + $0xc] sm:$0xf]
        %v420 = vld [vmem:[%s4] ss:$4 sm:$0x3]
        %v422 = vlaneseq
        %v423 = vshrl.u32 %v422, 7
        %v424 = vsub.s32 0, %v423
        %v425 = vrot.slane %v420, %v424
        %v426 = vlaneseq
        %v427 = vshrl.u32 %v426, 7
        %v428 = vsub.s32 1, %v427
        %v429 = vrot.slane %v420, %v428
        %v430 = vcombine.low %v425, %v429
        %431 = vrot.lane.b32.xlu0 %v430, 15
        %v432 = vpop.permute.xlu0 %431
        %v433 = vrot.slane %v432, 4
        %v434 = vsel %vm329, %v433, %v432
        %v437 = vmul.f32 %v418, %v434
        %v438 = vmul.f32 %v419, %v433
        %v441 = vcombine.high %v437, %v437
        %442 = vrot.lane.b32.xlu0 %v437, 113
        %v443 = vpop.permute.xlu0 %442
        %444 = vrot.lane.b32.xlu0 %v441, 113
        %v445 = vpop.permute.xlu0 %444
        %446 = vrot.lane.b32.xlu0 %v438, 113
        %v447 = vpop.permute.xlu0 %446
        %v448 = vsel %vm314, %v443, %v445
        %v449 = vsel %vm314, %v445, %v447
        %452 = vst [vmem:[#allocation3 + $0x30] sm:$0xf] %v448
        %453 = vst [vmem:[#allocation3 + $0x38] sm:$0xf] %v449
        %v454 = vld [vmem:[#allocation2 + $0x4] sm:$0xff]
        %v455 = vld [vmem:[#allocation2 + $0xc] sm:$0xf]
        %v458 = vcombine.low %v454, %v454
        %v459 = vcombine.low %v455, %v455
        %460 = vrot.lane.b32.xlu0 %v458, 112
        %v461 = vpop.permute.xlu0 %460
        %462 = vrot.lane.b32.xlu0 %v454, 112
        %v463 = vpop.permute.xlu0 %462
        %464 = vrot.lane.b32.xlu0 %v459, 112
        %v465 = vpop.permute.xlu0 %464
        %vm466 = vcmask 916480
        %v467 = vsel %vm466, %v461, %v463
        %v468 = vsel %vm466, %v463, %v465
        %471 = vst [vmem:[#allocation3 + $0x30] sm:$0xf0] %v467
        %472 = vst [vmem:[#allocation3 + $0x38] sm:$0xf0] %v468
        %v473 = vld [vmem:[#allocation2 + $0x4] sm:$0xff]
        %v474 = vld [vmem:[#allocation2 + $0xc] sm:$0xf]
        %v475 = vld [vmem:[%s299] ss:$4 sm:$0x3]
        %v477 = vlaneseq
        %v478 = vshrl.u32 %v477, 7
        %v479 = vsub.s32 0, %v478
        %v480 = vrot.slane %v475, %v479
        %v481 = vlaneseq
        %v482 = vshrl.u32 %v481, 7
        %v483 = vsub.s32 1, %v482
        %v484 = vrot.slane %v475, %v483
        %v485 = vcombine.low %v480, %v484
        %486 = vrot.lane.b32.xlu0 %v485, 17
        %v487 = vpop.permute.xlu0 %486
        %v488 = vrot.slane %v487, 4
        %v489 = vsel %vm271, %v488, %v487
        %v492 = vmul.f32 %v473, %v489
        %v493 = vmul.f32 %v474, %v488
        %v496 = vcombine.high %v492, %v492
        %497 = vrot.lane.b32.xlu0 %v492, 111
        %v498 = vpop.permute.xlu0 %497
        %499 = vrot.lane.b32.xlu0 %v496, 111
        %v500 = vpop.permute.xlu0 %499
        %501 = vrot.lane.b32.xlu0 %v493, 111
        %v502 = vpop.permute.xlu0 %501
        %v503 = vsel %vm256, %v498, %v500
        %v504 = vsel %vm256, %v500, %v502
        %507 = vst [vmem:[#allocation3 + $0x40] sm:$0xf] %v503
        %508 = vst [vmem:[#allocation3 + $0x48] sm:$0xf] %v504
        %v509 = vld [vmem:[#allocation4] sm:$0xff]
        %v510 = vld [vmem:[#allocation3] sm:$0xff]
        %v511 = vld [vmem:[#allocation3 + $0x8] sm:$0xff]
        %v512 = vld [vmem:[#allocation3 + $0x10] sm:$0xff]
        %v513 = vld [vmem:[#allocation3 + $0x18] sm:$0xff]
        %v514 = vld [vmem:[#allocation3 + $0x20] sm:$0xff]
        %v515 = vld [vmem:[#allocation3 + $0x28] sm:$0xff]
        %v516 = vld [vmem:[#allocation3 + $0x30] sm:$0xff]
        %v517 = vld [vmem:[#allocation3 + $0x38] sm:$0xff]
        %v518 = vld [vmem:[#allocation3 + $0x40] sm:$0xf]
        %v519 = vld [vmem:[#allocation3 + $0x48] sm:$0xf]
        %vm520 = vcmask 293888
        %v522 = vsel %vm520, %v509, 0
        %vm524 = vcmask 1043456
        %v526 = vsel %vm524, %v518, 0
        %v529 = vsel %vm524, %v519, 0
        %531 = vmatprep.subr.mxu0 %v511
        %532 = vmatpush1.msra.mxu0 %v510
        %533 = vmatprep.subr.mxu0 %v513
        %534 = vmatpush1.msra.mxu0 %v512
        %535 = vmatprep.subr.mxu0 %v515
        %536 = vmatpush1.msra.mxu0 %v514
        %537 = vmatprep.subr.mxu0 %v517
        %538 = vmatpush1.msra.mxu0 %v516
        %539 = vmatprep.subr.mxu0 %v529
        %540 = vmatpush1.msra.mxu0 %v526
        %541 = vmatprep.subr.mxu0 0.0
        %542 = vmatpush1.msra.mxu0 0.0
        %543 = vmatprep.subr.mxu0 0.0
        %544 = vmatpush1.msra.mxu0 0.0
        %545 = vmatprep.subr.mxu0 0.0
        %546 = vmatpush1.msra.mxu0 0.0
        %547 = vmatprep.subr.mxu0 0.0
        %548 = vmatpush1.msra.mxu0 0.0
        %549 = vmatprep.subr.mxu0 0.0
        %550 = vmatpush1.msra.mxu0 0.0
        %551 = vmatprep.subr.mxu0 0.0
        %552 = vmatpush1.msra.mxu0 0.0
        %553 = vmatprep.subr.mxu0 0.0
        %554 = vmatpush1.msra.mxu0 0.0
        %555 = vmatprep.subr.mxu0 0.0
        %556 = vmatpush1.msra.mxu0 0.0
        %557 = vmatprep.subr.mxu0 0.0
        %558 = vmatpush1.msra.mxu0 0.0
        %559 = vmatprep.subr.mxu0 0.0
        %560 = vmatpush1.msra.mxu0 0.0
        %561 = vmatprep.subr.mxu0 0.0
        %562 = vmatpush1.msra.mxu0 0.0
        %563 = vmatprep.subr.mxu0 0.0
        %564 = vmatpush1.msra.mxu0 0.0
        %565 = vmatprep.subr.mxu0 0.0
        %566 = vmatpush1.msra.mxu0 0.0
        %567 = vmatprep.subr.mxu0 0.0
        %568 = vmatpush1.msra.mxu0 0.0
        %569 = vmatprep.subr.mxu0 0.0
        %570 = vmatpush1.msra.mxu0 0.0
        %571 = vmatprep.subr.mxu0 0.0
        %572 = vmatpush1.msra.mxu0 0.0
        %573 = vmatprep.subr.mxu0 0.0
        %574 = vmatpush1.msra.mxu0 0.0
        %575 = vmatprep.subr.mxu0 0.0
        %576 = vmatpush1.msra.mxu0 0.0
        %577 = vmatprep.subr.mxu0 0.0
        %578 = vmatpush1.msra.mxu0 0.0
        %579 = vmatprep.subr.mxu0 0.0
        %580 = vmatpush1.msra.mxu0 0.0
        %581 = vmatprep.subr.mxu0 0.0
        %582 = vmatpush1.msra.mxu0 0.0
        %583 = vmatprep.subr.mxu0 0.0
        %584 = vmatpush1.msra.mxu0 0.0
        %585 = vmatprep.subr.mxu0 0.0
        %586 = vmatpush1.msra.mxu0 0.0
        %587 = vmatprep.subr.mxu0 0.0
        %588 = vmatpush1.msra.mxu0 0.0
        %589 = vmatprep.subr.mxu0 0.0
        %590 = vmatpush1.msra.mxu0 0.0
        %591 = vmatprep.subr.mxu0 0.0
        %592 = vmatpush1.msra.mxu0 0.0
        %593 = vmatprep.subr.mxu0 0.0
        %594 = vmatpush1.msra.mxu0 0.0
        %595 = vmatprep.mubr.f32.mxu0 0.0
        %596 = vmatmul.mubr.f32.gmra.mrb[0].mxu0 %v522
        %v597 = vpop.f32.mrb[0].mxu0
        %v598 = vadd.f32 0.0, %v597
        %v599 = vpop.f32.mrb[0].mxu0
        %v600 = vadd.f32 0.0, %v599
        %601 = vdwg.mxu0
        %v602 = vadd.f32 %v598, %v600
        %603 = vadd.xlane.f32.xlu0 %v602
        %v604 = vpop.xlane.xlu0 %603
        %v605 = vrcp.pop 256.0
        %v606 = vmul.f32 %v604, %v605
        %v607 = vsub.f32 %v598, %v606
        %v608 = vsub.f32 %v600, %v606
        %v609 = vmul.f32 %v607, %v607
        %v610 = vmul.f32 %v608, %v608
        %v611 = vadd.f32 %v609, %v610
        %612 = vadd.xlane.f32.xlu0 %v611
        %v613 = vpop.xlane.xlu0 %612
        %v614 = vmul.f32 %v613, %v605
        %v615 = vadd.f32 %v614, 1e-05
        %v616 = vrsqrt.pop %v615
        %v617 = vmul.f32 %v607, %v616
        %v618 = vmul.f32 %v608, %v616
        %v619 = vld [vmem:[%s2] sm:$0xff]
        %621 = vset.pattern.permute.xlu0 0
        %622 = vperm.xlu0 %621, %v619
        %v623 = vpop.permute.xlu0 %622
        %v625 = vmul.f32 %v617, %v623
        %v626 = vmul.f32 %v618, %v623
        %v627 = vld [vmem:[%s3] sm:$0xff]
        %629 = vset.pattern.permute.xlu0 0
        %630 = vperm.xlu0 %629, %v627
        %v631 = vpop.permute.xlu0 %630
        %v633 = vadd.f32 %v625, %v631
        %v634 = vadd.f32 %v626, %v631
        %vm635 = vcmp.ge.f32.partialorder %v633, 0.0
        %vm636 = vcmp.ge.f32.partialorder %v634, 0.0
        %v637 = vmul.f32 %v633, 0.01
        %v638 = vmul.f32 %v634, 0.01
        %v639 = vsel %vm635, %v633, %v637
        %v640 = vsel %vm636, %v634, %v638
        %641 = vst [vmem:[%s230] sm:$0xff] %v639
        %642 = vst [vmem:[%s230 + $0x8] sm:$0xff] %v640
        %s643 = sand.u32 %s138, 1
        %s644 = scalar_lea.sflag [#allocation6], %s643
        %s645 = sand.u32 %s138, 1
        %s646 = smul.addr %s645, 16
        %s647 = scalar_lea.vmem [#allocation7], %s646
        // Predicated region
        $region45: #{tpu_custom_call.1} parent=39 // pred_check
          %p648 = pneg %p148
        $region46: #{tpu_custom_call.1} parent=39 // pred_check_branch
          %650 = sbr.rel (%p648) target = $region48
        $region47: #{tpu_custom_call.1} parent=39 // pred_region
          %s652 = ssub.s32 256, 256
          %653 = vsyncadd %s644, %s652
          %s654 = smul.addr %s20, 2
          %s655 = smul.addr %s654, 128
          %s656 = scalar_lea.hbm %s5, %s655
          %s658 = sshll.u32 %s647, 4
          %s659 = int_to_ptr.vmem [resolvable:$true] %s658
          %661 = dma.vmem_to_hbm [thread:$0]  %s659, 256, %s656, %s644
        $region48: #{tpu_custom_call.1} parent=39 // pred_fallthru
          _
      $region40: #{tpu_custom_call.1} parent=5 // pred_fallthru
        _
      %p662 = scmp.le.s32.totalorder 2, %s15
      // Predicated region
      $region49: #{tpu_custom_call.1} parent=5 // pred_check
        %p663 = pneg %p662
      $region50: #{tpu_custom_call.1} parent=5 // pred_check_branch
        %665 = sbr.rel (%p663) target = $region52
      $region51: #{tpu_custom_call.1} parent=5 // pred_region
        %s666 = ssub.s32 %s15, 2
        // Predicated region
        $region53: #{tpu_custom_call.1} parent=51 // pred_check
          %p667 = pneg %p154
        $region54: #{tpu_custom_call.1} parent=51 // pred_check_branch
          %669 = sbr.rel (%p667) target = $region56
        $region55: #{tpu_custom_call.1} parent=51 // pred_region
          %s670 = sand.u32 %s139, 1
          %s671 = scalar_lea.sflag [#allocation6], %s670
          %s672 = sand.u32 %s139, 1
          %s673 = smul.addr %s672, 16
          %s674 = scalar_lea.vmem [#allocation7], %s673
          %675 = dma.done %s671, 256
        $region56: #{tpu_custom_call.1} parent=51 // pred_fallthru
          _
      $region52: #{tpu_custom_call.1} parent=5 // pred_fallthru
        _
    $region6: #{tpu_custom_call.1} parent=1 // loop_footer
      %s19 = sadd.s32 1, %s15
    $region7: #{tpu_custom_call.1} parent=1 // loop_footer_branch
      %14 = sbr.rel target = $region3
    $region8: #{tpu_custom_call.1} parent=1 // loop_exit
      _
    %676 = vsyncpa [#allocation5], 1
    %s677 = scalar_lea.sflag [#allocation5], 1
    %678 = vsyncpa %s677, 1
    %679 = vsyncpa [#allocation6], 1
    %s680 = scalar_lea.sflag [#allocation6], 1
    %681 = vsyncpa %s680, 1

</llo_original>
